<compile_context>
chip_gen: v7x
topology: tpu7x:2x2x1
jax: 0.10.0
libtpu: 0.0.40
codegen_flags: <defaults>
</compile_context>

<pallas_src>
import functools

import jax
import jax.numpy as jnp
from jax.experimental import pallas as pl
from jax.experimental.pallas import tpu as pltpu


def _ce2d_kernel(logits_ref, target_ref, loss_ref, partial_ref, *,
                 hw, tile_l, num_classes, ignore_label, ignore_coarse_label,
                 mxu_class_sums):
    # Blocks: logits (1, C, tile_l); target/loss (1, 1, tile_l);
    #         partial (1, 1, 2, 128).
    logits = logits_ref[0].astype(jnp.float32)               # (C, tile_l) f32
    tgt = target_ref[0]                                        # (1, tile_l) i32

    # One-hot gather of logits[target] over the class (sublane) axis.
    # Note: the iota is re-materialized every grid step (cheap); C not a
    # multiple of 8 pads the slab to ceil(C/8)*8 sublanes — irrelevant while
    # HBM-bound, but one more reason the MXU-sum offload helps on v7x.
    c_iota = jax.lax.broadcasted_iota(jnp.int32, logits.shape, 0)
    onehot_logits = jnp.where(c_iota == tgt, logits, 0.0)      # (C, tile_l)

    # Numerically-stable log-sum-exp over the class axis.
    m = jnp.max(logits, axis=0, keepdims=True)                 # (1, tile_l)
    p = jnp.exp(logits - m)                                     # (C, tile_l) EUP

    if mxu_class_sums:
        # v7x: push the two sublane sums to the idle MXU (frees VALU/XLU).
        ones_row = jnp.ones((1, num_classes), dtype=jnp.float32)
        sum_exp = jnp.dot(ones_row, p, preferred_element_type=jnp.float32)
        tgt_logit = jnp.dot(ones_row, onehot_logits,
                            preferred_element_type=jnp.float32)
    else:
        sum_exp = jnp.sum(p, axis=0, keepdims=True)             # (1, tile_l)
        tgt_logit = jnp.sum(onehot_logits, axis=0, keepdims=True)

    raw_loss = jnp.log(sum_exp) + m - tgt_logit                 # (1, tile_l)

    # Validity mask from the target alone (tail-of-array masking handled
    # below, only on the last tile).
    valid = (tgt >= 0) & (tgt != ignore_label)
    if ignore_coarse_label is not None:
        valid = valid & (tgt < ignore_coarse_label)
    # TODO(synk): valid targets with value >= C silently yield loss = lse
    # (PyTorch would raise); add a pl.debug_check for interpret-mode runs.

    def _emit(valid_row):
        loss = jnp.where(valid_row, raw_loss, 0.0)              # (1, tile_l)
        loss_ref[...] = loss[None]                               # (1,1,tile_l)
        # Per-tile partial sums -> no second HBM pass for the mean.
        lsum = jnp.sum(loss, axis=1, keepdims=True)              # (1, 1)
        csum = jnp.sum(valid_row.astype(jnp.float32), axis=1, keepdims=True)
        partial_ref[...] = jnp.concatenate(
            [jnp.broadcast_to(lsum, (1, 128)),
             jnp.broadcast_to(csum, (1, 128))], axis=0)[None, None]

    if hw % tile_l == 0:
        _emit(valid)
    else:
        # Only the ragged last lane tile pays the iota/compare tail mask.
        j = pl.program_id(1)
        last = pl.num_programs(1) - 1

        @pl.when(j < last)
        def _():
            _emit(valid)

        @pl.when(j == last)
        def _():
            pix = j * tile_l + jax.lax.broadcasted_iota(jnp.int32, tgt.shape, 1)
            _emit(valid & (pix < hw))


def cross_entropy_2d(predict, target, *, ignore_label=255,
                     ignore_coarse_label=None, max_tile_l=2048,
                     vmem_tile_budget_bytes=8 << 20, mxu_class_sums=False,
                     extra_input_buffering=None):
    """predict: (N, C, H, W) float32 or bfloat16; target: (N, H, W) int.

    Returns (mean loss over valid pixels, per-pixel loss map (N, H, W) with
    zeros at ignored pixels).
    """
    # TODO(synk): optional per-class `weight` and `day_mask` batch selection
    # of the reference (defaults weight=None, day_mask=None) not implemented.
    n, c, h, w = predict.shape
    assert target.shape == (n, h, w)
    assert jnp.issubdtype(predict.dtype, jnp.floating)
    hw = h * w

    # NCHW-native: free reshapes only (no transpose pass, no padded HBM copy).
    logits = predict.reshape(n, c, hw)
    tgt = target.astype(jnp.int32).reshape(n, 1, hw)

    # --- lane-tile sizing: budget counts intermediates, not just the two
    # double-buffered input tiles ---------------------------------------------
    in_itemsize = jnp.dtype(predict.dtype).itemsize
    # Per lane column:
    #   2 double-buffered (C, tile_l) input tiles          : 2*C*in_itemsize
    #   ~4 (C, tile_l) f32 intermediates (upcast/iota/onehot/exp) : 16*C
    #   (1, tile_l) rows: target/loss buffers + m/lse/valid temps : ~64 B
    per_lane_bytes = 2 * c * in_itemsize + 16 * c + 64
    max_l = max(128, (vmem_tile_budget_bytes // per_lane_bytes) // 128 * 128)
    hw_pad = pl.cdiv(hw, 128) * 128
    tile_l = int(min(max_l, max_tile_l, hw_pad))
    grid_l = int(pl.cdiv(hw, tile_l))
    grid = (n, grid_l)

    # Explicit scoped-VMEM limit: safe on v5e (16 MiB default), v6e (32 MiB)
    # and v7x (64 MiB physical VMEM per TC).
    est_vmem = per_lane_bytes * tile_l + (1 << 20)
    vmem_limit = int(min(32 << 20, max(16 << 20, 2 * est_vmem)))

    logits_idx = lambda b, j: (b, 0, j)
    if extra_input_buffering is None:
        logits_spec = pl.BlockSpec((1, c, tile_l), logits_idx)
    else:
        # Optional (v7x): deeper buffering on the dominant input stream.
        logits_spec = pl.BlockSpec((1, c, tile_l), logits_idx,
                                   pipeline_mode=pl.Buffered(extra_input_buffering))

    kernel = functools.partial(
        _ce2d_kernel, hw=hw, tile_l=tile_l, num_classes=c,
        ignore_label=ignore_label, ignore_coarse_label=ignore_coarse_label,
        mxu_class_sums=mxu_class_sums)

    loss, partials = pl.pallas_call(
        kernel,
        out_shape=(jax.ShapeDtypeStruct((n, 1, hw), jnp.float32),
                   jax.ShapeDtypeStruct((n, grid_l, 2, 128), jnp.float32)),
        grid_spec=pltpu.PrefetchScalarGridSpec(
            num_scalar_prefetch=0,
            grid=grid,
            in_specs=[
                logits_spec,
                pl.BlockSpec((1, 1, tile_l), lambda b, j: (b, 0, j)),
            ],
            out_specs=[
                pl.BlockSpec((1, 1, tile_l), lambda b, j: (b, 0, j)),
                pl.BlockSpec((1, 1, 2, 128), lambda b, j: (b, j, 0, 0)),
            ],
        ),
        compiler_params=pltpu.CompilerParams(
            dimension_semantics=("parallel", "parallel"),
            vmem_limit_bytes=vmem_limit),
    )(logits, tgt)

    loss_map = loss.reshape(n, h, w)

    # Mean over valid pixels from the tiny per-tile partials (no second pass
    # over the (N, HW) loss map or the int32 target).
    total_loss = jnp.sum(partials[:, :, 0, 0])
    total_cnt = jnp.sum(partials[:, :, 1, 0])
    mean_loss = total_loss / jnp.maximum(total_cnt, 1.0)
    return mean_loss, loss_map


def _reference(predict, target, ignore_label=255, ignore_coarse_label=None):
    n, c, h, w = predict.shape
    logits = jnp.transpose(predict, (0, 2, 3, 1)).reshape(-1, c).astype(jnp.float32)
    tgt = target.reshape(-1).astype(jnp.int32)
    valid = (tgt >= 0) & (tgt != ignore_label)
    if ignore_coarse_label is not None:
        valid = valid & (tgt < ignore_coarse_label)
    logp = jax.nn.log_softmax(logits, axis=-1)
    safe_tgt = jnp.where(valid, tgt, 0)
    per_pix = -jnp.take_along_axis(logp, safe_tgt[:, None], axis=-1)[:, 0]
    per_pix = jnp.where(valid, per_pix, 0.0)
    mean = jnp.sum(per_pix) / jnp.maximum(jnp.sum(valid), 1)
    return mean, per_pix.reshape(n, h, w)


if __name__ == "__main__":
    key = jax.random.PRNGKey(0)
    k1, k2, k3, k4 = jax.random.split(key, 4)

    # ---- Test 1: f32 logits, exact lane tiling (hw % tile_l == 0) -----------
    N, C, H, W = 2, 4, 16, 16
    predict = jax.random.normal(k1, (N, C, H, W), dtype=jnp.float32)
    target = jax.random.randint(k2, (N, H, W), 0, C).astype(jnp.int32)
    target = target.at[0, 0, :4].set(255)           # some ignore_label pixels

    mean_loss, loss_map = cross_entropy_2d(predict, target, ignore_label=255)
    jax.block_until_ready((mean_loss, loss_map))

    ref_mean, ref_map = _reference(predict, target, ignore_label=255)
    assert jnp.allclose(mean_loss, ref_mean, atol=1e-5, rtol=1e-5)
    assert jnp.allclose(loss_map, ref_map, atol=1e-5, rtol=1e-5)

    # ---- Test 2: bf16 logits (half the HBM stream), ragged lane tail,
    # non-multiple-of-8 class count, coarse-label masking ----------------------
    N2, C2, H2, W2 = 2, 5, 10, 13
    predict2 = jax.random.normal(k3, (N2, C2, H2, W2),
                                 dtype=jnp.float32).astype(jnp.bfloat16)
    target2 = jax.random.randint(k4, (N2, H2, W2), 0, C2).astype(jnp.int32)
    target2 = target2.at[1, 2, :5].set(255)

    mean2, map2 = cross_entropy_2d(predict2, target2, ignore_label=255,
                                   ignore_coarse_label=4)
    jax.block_until_ready((mean2, map2))

    ref_mean2, ref_map2 = _reference(predict2.astype(jnp.float32), target2,
                                     ignore_label=255, ignore_coarse_label=4)
    assert jnp.allclose(mean2, ref_mean2, atol=1e-5, rtol=1e-5)
    assert jnp.allclose(map2, ref_map2, atol=1e-5, rtol=1e-5)

    print("KERNEL_OK")
</pallas_src>

<mosaic_0001>
module attributes {stable_mosaic.version = 11 : i64} {
  func.func @_ce2d_kernel(%arg0: i32, %arg1: i32, %arg2: memref<1x4x256xf32, #tpu.memory_space<vmem>>, %arg3: memref<1x1x256xi32, #tpu.memory_space<vmem>>, %arg4: memref<1x1x256xf32, #tpu.memory_space<vmem>>, %arg5: memref<1x1x2x128xf32, #tpu.memory_space<vmem>>) attributes {dimension_semantics = [#tpu.dimension_semantics<parallel>, #tpu.dimension_semantics<parallel>], iteration_bounds = array<i64: 2, 1>, scalar_prefetch = 0 : i64, scratch_operands = 0 : i64, tpu.core_type = #tpu.core_type<tc>, window_params = [{transform_indices = @transform_0, window_bounds = array<i64: 1, 4, 256>}, {transform_indices = @transform_1, window_bounds = array<i64: 1, 1, 256>}, {transform_indices = @transform_2, window_bounds = array<i64: 1, 1, 256>}, {transform_indices = @transform_3, window_bounds = array<i64: 1, 1, 2, 128>}]} {
    %c0 = arith.constant 0 : index
    %c0_0 = arith.constant 0 : index
    %c0_1 = arith.constant 0 : index
    %0 = vector.load %arg2[%c0, %c0_0, %c0_1] : memref<1x4x256xf32, #tpu.memory_space<vmem>>, vector<1x4x256xf32>
    %1 = vector.shape_cast %0 : vector<1x4x256xf32> to vector<4x256xf32>
    %c0_2 = arith.constant 0 : index
    %c0_3 = arith.constant 0 : index
    %c0_4 = arith.constant 0 : index
    %2 = vector.load %arg3[%c0_2, %c0_3, %c0_4] : memref<1x1x256xi32, #tpu.memory_space<vmem>>, vector<1x1x256xi32>
    %3 = vector.shape_cast %2 : vector<1x1x256xi32> to vector<1x256xi32>
    %4 = tpu.iota {dimensions = array<i32: 0>} : vector<4x256xi32>
    %5 = vector.broadcast %3 : vector<1x256xi32> to vector<4x256xi32>
    %6 = arith.cmpi eq, %4, %5 : vector<4x256xi32>
    %cst = arith.constant 0.000000e+00 : f32
    %7 = vector.broadcast %cst : f32 to vector<4x256xf32>
    %8 = arith.select %6, %1, %7 : vector<4x256xi1>, vector<4x256xf32>
    %cst_5 = arith.constant dense<0xFF800000> : vector<256xf32>
    %9 = vector.multi_reduction <maximumf>, %1, %cst_5 [0] : vector<4x256xf32> to vector<256xf32>
    %10 = vector.shape_cast %9 : vector<256xf32> to vector<1x256xf32>
    %11 = vector.broadcast %10 : vector<1x256xf32> to vector<4x256xf32>
    %12 = arith.subf %1, %11 : vector<4x256xf32>
    %13 = math.exp %12 : vector<4x256xf32>
    %cst_6 = arith.constant dense<0.000000e+00> : vector<256xf32>
    %14 = vector.multi_reduction <add>, %13, %cst_6 [0] : vector<4x256xf32> to vector<256xf32>
    %15 = vector.shape_cast %14 : vector<256xf32> to vector<1x256xf32>
    %cst_7 = arith.constant dense<0.000000e+00> : vector<256xf32>
    %16 = vector.multi_reduction <add>, %8, %cst_7 [0] : vector<4x256xf32> to vector<256xf32>
    %17 = vector.shape_cast %16 : vector<256xf32> to vector<1x256xf32>
    %18 = math.log %15 : vector<1x256xf32>
    %19 = arith.addf %18, %10 : vector<1x256xf32>
    %20 = arith.subf %19, %17 : vector<1x256xf32>
    %c0_i32 = arith.constant 0 : i32
    %21 = vector.broadcast %c0_i32 : i32 to vector<1x256xi32>
    %22 = arith.cmpi sge, %3, %21 : vector<1x256xi32>
    %c255_i32 = arith.constant 255 : i32
    %23 = vector.broadcast %c255_i32 : i32 to vector<1x256xi32>
    %24 = arith.cmpi ne, %3, %23 : vector<1x256xi32>
    %25 = arith.andi %22, %24 : vector<1x256xi1>
    %cst_8 = arith.constant 0.000000e+00 : f32
    %26 = vector.broadcast %cst_8 : f32 to vector<1x256xf32>
    %27 = arith.select %25, %20, %26 : vector<1x256xi1>, vector<1x256xf32>
    %28 = vector.shape_cast %27 : vector<1x256xf32> to vector<1x1x256xf32>
    %c0_9 = arith.constant 0 : index
    %c0_10 = arith.constant 0 : index
    %c0_11 = arith.constant 0 : index
    %29 = vector.load %arg4[%c0_9, %c0_10, %c0_11] : memref<1x1x256xf32, #tpu.memory_space<vmem>>, vector<1x1x256xf32>
    tpu.vector_store %arg4[%c0_9, %c0_10, %c0_11], %28 {strides = array<i32>} : memref<1x1x256xf32, #tpu.memory_space<vmem>>, vector<1x1x256xf32>,
    %cst_12 = arith.constant dense<0.000000e+00> : vector<1xf32>
    %30 = vector.multi_reduction <add>, %27, %cst_12 [1] : vector<1x256xf32> to vector<1xf32>
    %31 = vector.shape_cast %30 : vector<1xf32> to vector<1x1xf32>
    %32 = arith.extui %25 : vector<1x256xi1> to vector<1x256xi32>
    %33 = arith.sitofp %32 : vector<1x256xi32> to vector<1x256xf32>
    %cst_13 = arith.constant dense<0.000000e+00> : vector<1xf32>
    %34 = vector.multi_reduction <add>, %33, %cst_13 [1] : vector<1x256xf32> to vector<1xf32>
    %35 = vector.shape_cast %34 : vector<1xf32> to vector<1x1xf32>
    %36 = vector.shape_cast %31 : vector<1x1xf32> to vector<1x1xf32>
    %37 = vector.broadcast %36 : vector<1x1xf32> to vector<1x128xf32>
    %38 = vector.shape_cast %35 : vector<1x1xf32> to vector<1x1xf32>
    %39 = vector.broadcast %38 : vector<1x1xf32> to vector<1x128xf32>
    %40 = tpu.concatenate %37, %39 in 0 : vector<1x128xf32>, vector<1x128xf32> -> vector<2x128xf32>
    %41 = vector.shape_cast %40 : vector<2x128xf32> to vector<1x1x2x128xf32>
    %c0_14 = arith.constant 0 : index
    %c0_15 = arith.constant 0 : index
    %c0_16 = arith.constant 0 : index
    %c0_17 = arith.constant 0 : index
    %42 = vector.load %arg5[%c0_14, %c0_15, %c0_16, %c0_17] : memref<1x1x2x128xf32, #tpu.memory_space<vmem>>, vector<1x1x2x128xf32>
    tpu.vector_store %arg5[%c0_14, %c0_15, %c0_16, %c0_17], %41 {strides = array<i32>} : memref<1x1x2x128xf32, #tpu.memory_space<vmem>>, vector<1x1x2x128xf32>,
    return
  }
  func.func @transform_0(%arg0: i32, %arg1: i32) -> (i32, i32, i32) {
    %c0_i32 = arith.constant 0 : i32
    %c0_i32_0 = arith.constant 0 : i32
    return %arg0, %c0_i32, %arg1 : i32, i32, i32
  }
  func.func @transform_1(%arg0: i32, %arg1: i32) -> (i32, i32, i32) {
    %c0_i32 = arith.constant 0 : i32
    %c0_i32_0 = arith.constant 0 : i32
    return %arg0, %c0_i32, %arg1 : i32, i32, i32
  }
  func.func @transform_2(%arg0: i32, %arg1: i32) -> (i32, i32, i32) {
    %c0_i32 = arith.constant 0 : i32
    %c0_i32_0 = arith.constant 0 : i32
    return %arg0, %c0_i32, %arg1 : i32, i32, i32
  }
  func.func @transform_3(%arg0: i32, %arg1: i32) -> (i32, i32, i32, i32) {
    %c0_i32 = arith.constant 0 : i32
    %c0_i32_0 = arith.constant 0 : i32
    %c0_i32_1 = arith.constant 0 : i32
    return %arg0, %arg1, %c0_i32, %c0_i32_0 : i32, i32, i32, i32
  }
}

</mosaic_0001>

<llo_original>
// kernel: tpu_custom_call.1
$region0: #{tpu_custom_call.1}
  #allocation0 [shape = 'u32[]', space=smem, size = 0x4, offset = 0x4, fixed_abs, tag = 'smem constant byte address 0x4 - core index']
  #allocation1 [shape = 'u32[144,128]{1,0:T(1,128)}', space=vmem, size = 0x12000, scoped, tag = 'internal scratch']
  %s0 = inlined_call_operand.hbm [shape: f32[2,4,256], index: 0, kind: input, shape index: {}]
  %s1 = inlined_call_operand.hbm [shape: s32[2,1,256], index: 1, kind: input, shape index: {}]
  %s2 = inlined_call_operand.hbm [shape: f32[2,1,256], index: 2, kind: output, shape index: {0}]
  %s3 = inlined_call_operand.hbm [shape: f32[2,1,2,128], index: 3, kind: output, shape index: {1}]
  %4 = xla_tuple %s2, %s3
  %s5 = sld [smem:[#allocation0]]
  $region57: #{tpu_custom_call.1} parent=0
    _
  %s7 = ssub.s32 1, %s5
  %s8 = scalar_select 0, %s7, %s5
  $region1: #{tpu_custom_call.1} parent=0
    #allocation2 [shape = 'u8[8192]{0}', space=vmem, size = 0x2000, scoped, tag = 'input window, operand 0']
    #allocation3 [shape = 's32[2]{0}', space=sflag, size = 0x8, scoped, tag = 'scoped memory for tpu_custom_call.1']
    #allocation4 [shape = 's32[2]{0}', space=sflag, size = 0x8, scoped, tag = 'scoped memory for tpu_custom_call.1']
    #allocation5 [shape = 'u8[2048]{0}', space=vmem, size = 0x800, scoped, tag = 'input window, operand 1']
    #allocation6 [shape = 's32[2]{0}', space=sflag, size = 0x8, scoped, tag = 'scoped memory for tpu_custom_call.1']
    #allocation7 [shape = 'u8[2048]{0}', space=vmem, size = 0x800, scoped, tag = 'output window, operand 0']
    #allocation8 [shape = 'u8[2048]{0}', space=vmem, size = 0x800, scoped, tag = 'output window, operand 1']
    #allocation9 [shape = 's32[2]{0}', space=sflag, size = 0x8, scoped, tag = 'scoped memory for tpu_custom_call.1']
    %9 = vsyncpa [#allocation3], 0
    %s10 = scalar_lea.sflag [#allocation3], 1
    %11 = vsyncpa %s10, 0
    %12 = vsyncpa [#allocation6], 0
    %s13 = scalar_lea.sflag [#allocation6], 1
    %14 = vsyncpa %s13, 0
    %15 = vsyncpa [#allocation4], 0
    %s16 = scalar_lea.sflag [#allocation4], 1
    %17 = vsyncpa %s16, 0
    %18 = vsyncpa [#allocation9], 0
    %s19 = scalar_lea.sflag [#allocation9], 1
    %20 = vsyncpa %s19, 0
    loop: start=0, step=1, limit=4
    $region2: #{tpu_custom_call.1} parent=1 // loop_pre_header
      _
    $region3: #{tpu_custom_call.1} parent=1 // loop_header
      %s22 = sphi 0, %s26
      %p23 = scmp.ge.s32.totalorder %s22, 4
      %s29 = sphi 0, %s41
      %s30 = sphi 0, %s37
      %s31 = sphi 0, %s29
      %s32 = sphi 0, %s30
      %s33 = sphi 0, %s31
      %s34 = sphi 0, %s32
      %s46 = sphi 0, %s48
      %s49 = sphi 0, %s46
      %s50 = sphi 0, %s49
      %s66 = sphi 0, %s50
      %s74 = sphi 0, %s76
      %s77 = sphi 0, %s74
      %s78 = sphi 0, %s77
      %s94 = sphi 0, %s78
      %s102 = sphi 0, %s104
      %s105 = sphi 0, %s102
      %s106 = sphi 0, %s105
      %s122 = sphi 0, %s106
      %s130 = sphi 0, %s132
      %s133 = sphi 0, %s130
      %s134 = sphi 0, %s133
      %s150 = sphi 0, %s134
    $region4: #{tpu_custom_call.1} parent=1 // loop_header_branch
      %25 = sbr.rel (%p23) target = $region8
    $region5: #{tpu_custom_call.1} parent=1 // loop_body
      %s27 = ssub.s32 %s22, 1
      %s28 = ssub.s32 %s22, 2
      %s35 = sadd.s32 1, %s30
      %p36 = scmp.ge.s32.totalorder %s35, 1
      %s37 = scalar_select %p36, 0, %s35
      %s38 = sadd.s32 1, %s29
      %s39 = scalar_select %p36, %s38, %s29
      %p40 = scmp.ge.s32.totalorder %s39, 2
      %s41 = scalar_select %p40, 0, %s39
      %s42 = ssub.s32 %s29, %s41
      %s43 = ssub.s32 %s30, %s37
      %s44 = sor.u32 %s42, %s43
      %p45 = scmp.eq.s32.totalorder %s44, 0
      %s47 = sadd.s32 %s46, 1
      %s48 = scalar_select %p45, %s46, %s47
      %p51 = pneg %p45
      %p52 = scmp.eq.s32.totalorder %s22, 1
      %p53 = por %p51, %p52
      %p54 = scmp.ne.s32.totalorder %s46, %s49
      %p55 = scmp.eq.s32.totalorder %s22, 0
      %p56 = por %p54, %p55
      %p57 = scmp.ne.s32.totalorder %s46, %s49
      %p58 = scmp.eq.s32.totalorder %s27, 1
      %p59 = por %p57, %p58
      %p60 = scmp.ne.s32.totalorder %s49, %s50
      %p61 = scmp.eq.s32.totalorder %s27, 0
      %p62 = por %p60, %p61
      %p63 = scmp.ne.s32.totalorder %s49, %s50
      %p64 = scmp.eq.s32.totalorder %s28, 1
      %p65 = por %p63, %p64
      %p67 = scmp.ne.s32.totalorder %s50, %s66
      %p68 = scmp.eq.s32.totalorder %s28, 0
      %p69 = por %p67, %p68
      %s70 = ssub.s32 %s29, %s41
      %s71 = ssub.s32 %s30, %s37
      %s72 = sor.u32 %s70, %s71
      %p73 = scmp.eq.s32.totalorder %s72, 0
      %s75 = sadd.s32 %s74, 1
      %s76 = scalar_select %p73, %s74, %s75
      %p79 = pneg %p73
      %p80 = scmp.eq.s32.totalorder %s22, 1
      %p81 = por %p79, %p80
      %p82 = scmp.ne.s32.totalorder %s74, %s77
      %p83 = scmp.eq.s32.totalorder %s22, 0
      %p84 = por %p82, %p83
      %p85 = scmp.ne.s32.totalorder %s74, %s77
      %p86 = scmp.eq.s32.totalorder %s27, 1
      %p87 = por %p85, %p86
      %p88 = scmp.ne.s32.totalorder %s77, %s78
      %p89 = scmp.eq.s32.totalorder %s27, 0
      %p90 = por %p88, %p89
      %p91 = scmp.ne.s32.totalorder %s77, %s78
      %p92 = scmp.eq.s32.totalorder %s28, 1
      %p93 = por %p91, %p92
      %p95 = scmp.ne.s32.totalorder %s78, %s94
      %p96 = scmp.eq.s32.totalorder %s28, 0
      %p97 = por %p95, %p96
      %s98 = ssub.s32 %s29, %s41
      %s99 = ssub.s32 %s30, %s37
      %s100 = sor.u32 %s98, %s99
      %p101 = scmp.eq.s32.totalorder %s100, 0
      %s103 = sadd.s32 %s102, 1
      %s104 = scalar_select %p101, %s102, %s103
      %p107 = pneg %p101
      %p108 = scmp.eq.s32.totalorder %s22, 1
      %p109 = por %p107, %p108
      %p110 = scmp.ne.s32.totalorder %s102, %s105
      %p111 = scmp.eq.s32.totalorder %s22, 0
      %p112 = por %p110, %p111
      %p113 = scmp.ne.s32.totalorder %s102, %s105
      %p114 = scmp.eq.s32.totalorder %s27, 1
      %p115 = por %p113, %p114
      %p116 = scmp.ne.s32.totalorder %s105, %s106
      %p117 = scmp.eq.s32.totalorder %s27, 0
      %p118 = por %p116, %p117
      %p119 = scmp.ne.s32.totalorder %s105, %s106
      %p120 = scmp.eq.s32.totalorder %s28, 1
      %p121 = por %p119, %p120
      %p123 = scmp.ne.s32.totalorder %s106, %s122
      %p124 = scmp.eq.s32.totalorder %s28, 0
      %p125 = por %p123, %p124
      %s126 = ssub.s32 %s29, %s41
      %s127 = ssub.s32 %s30, %s37
      %s128 = sor.u32 %s126, %s127
      %p129 = scmp.eq.s32.totalorder %s128, 0
      %s131 = sadd.s32 %s130, 1
      %s132 = scalar_select %p129, %s130, %s131
      %p135 = pneg %p129
      %p136 = scmp.eq.s32.totalorder %s22, 1
      %p137 = por %p135, %p136
      %p138 = scmp.ne.s32.totalorder %s130, %s133
      %p139 = scmp.eq.s32.totalorder %s22, 0
      %p140 = por %p138, %p139
      %p141 = scmp.ne.s32.totalorder %s130, %s133
      %p142 = scmp.eq.s32.totalorder %s27, 1
      %p143 = por %p141, %p142
      %p144 = scmp.ne.s32.totalorder %s133, %s134
      %p145 = scmp.eq.s32.totalorder %s27, 0
      %p146 = por %p144, %p145
      %p147 = scmp.ne.s32.totalorder %s133, %s134
      %p148 = scmp.eq.s32.totalorder %s28, 1
      %p149 = por %p147, %p148
      %p151 = scmp.ne.s32.totalorder %s134, %s150
      %p152 = scmp.eq.s32.totalorder %s28, 0
      %p153 = por %p151, %p152
      %p154 = scmp.le.s32.totalorder 1, %s22
      %p155 = scmp.lt.s32.totalorder %s22, 3
      %p156 = pnand %p154, %p155
      %p157 = pneg %p156
      // Predicated region
      $region9: #{tpu_custom_call.1} parent=5 // pred_check
        _
      $region10: #{tpu_custom_call.1} parent=5 // pred_check_branch
        %159 = sbr.rel (%p156) target = $region12
      $region11: #{tpu_custom_call.1} parent=5 // pred_region
        %s160 = ssub.s32 %s22, 1
      $region12: #{tpu_custom_call.1} parent=5 // pred_fallthru
        _
      %p161 = scmp.lt.s32.totalorder %s22, 2
      // Predicated region
      $region13: #{tpu_custom_call.1} parent=5 // pred_check
        %p162 = pneg %p161
      $region14: #{tpu_custom_call.1} parent=5 // pred_check_branch
        %164 = sbr.rel (%p162) target = $region16
      $region15: #{tpu_custom_call.1} parent=5 // pred_region
        // Predicated region
        $region17: #{tpu_custom_call.1} parent=15 // pred_check
          %p165 = pneg %p56
        $region18: #{tpu_custom_call.1} parent=15 // pred_check_branch
          %167 = sbr.rel (%p165) target = $region20
        $region19: #{tpu_custom_call.1} parent=15 // pred_region
          %s168 = sand.u32 %s46, 1
          %s169 = scalar_lea.sflag [#allocation3], %s168
          %s170 = sand.u32 %s46, 1
          %s171 = smul.addr %s170, 8
          %s172 = scalar_lea.vmem [#allocation2], %s171
          %s173 = smul.u32 2, %s30
          %s175 = ssub.s32 128, 128
          %176 = vsyncadd %s169, %s175
          %s177 = smul.addr %s29, 2
          %s178 = sadd.s32 %s173, %s177
          %s179 = smul.addr %s178, 64
          %s180 = scalar_lea.hbm %s0, %s179
          %s182 = sshll.u32 %s172, 4
          %s183 = int_to_ptr.vmem [resolvable:$true] %s182
          %185 = dma.hbm_to_vmem [thread:$0]  %s180, 128, %s183, %s169
        $region20: #{tpu_custom_call.1} parent=15 // pred_fallthru
          _
        // Predicated region
        $region21: #{tpu_custom_call.1} parent=15 // pred_check
          %p186 = pneg %p84
        $region22: #{tpu_custom_call.1} parent=15 // pred_check_branch
          %188 = sbr.rel (%p186) target = $region24
        $region23: #{tpu_custom_call.1} parent=15 // pred_region
          %s189 = sand.u32 %s74, 1
          %s190 = scalar_lea.sflag [#allocation6], %s189
          %s191 = sand.u32 %s74, 1
          %s192 = smul.addr %s191, 2
          %s193 = scalar_lea.vmem [#allocation5], %s192
          %s194 = smul.u32 2, %s30
          %s196 = ssub.s32 32, 32
          %197 = vsyncadd %s190, %s196
          %s198 = smul.addr %s29, 2
          %s199 = sadd.s32 %s194, %s198
          %s200 = smul.addr %s199, 16
          %s201 = scalar_lea.hbm %s1, %s200
          %s203 = sshll.u32 %s193, 4
          %s204 = int_to_ptr.vmem [resolvable:$true] %s203
          %206 = dma.hbm_to_vmem [thread:$0]  %s201, 32, %s204, %s190
        $region24: #{tpu_custom_call.1} parent=15 // pred_fallthru
          _
      $region16: #{tpu_custom_call.1} parent=5 // pred_fallthru
        _
      %p207 = scmp.le.s32.totalorder 1, %s22
      %p208 = scmp.lt.s32.totalorder %s22, 3
      %p209 = pnand %p207, %p208
      %p210 = pneg %p209
      // Predicated region
      $region25: #{tpu_custom_call.1} parent=5 // pred_check
        _
      $region26: #{tpu_custom_call.1} parent=5 // pred_check_branch
        %212 = sbr.rel (%p209) target = $region28
      $region27: #{tpu_custom_call.1} parent=5 // pred_region
        %s213 = ssub.s32 %s22, 1
        %s214 = sand.u32 %s49, 1
        %s215 = scalar_lea.sflag [#allocation3], %s214
        %s216 = sand.u32 %s49, 1
        %s217 = smul.addr %s216, 8
        %s218 = scalar_lea.vmem [#allocation2], %s217
        // Predicated region
        $region29: #{tpu_custom_call.1} parent=27 // pred_check
          %p219 = pneg %p62
        $region30: #{tpu_custom_call.1} parent=27 // pred_check_branch
          %221 = sbr.rel (%p219) target = $region32
        $region31: #{tpu_custom_call.1} parent=27 // pred_region
          %222 = dma.done %s215, 128
        $region32: #{tpu_custom_call.1} parent=27 // pred_fallthru
          _
        %s223 = sand.u32 %s77, 1
        %s224 = scalar_lea.sflag [#allocation6], %s223
        %s225 = sand.u32 %s77, 1
        %s226 = smul.addr %s225, 2
        %s227 = scalar_lea.vmem [#allocation5], %s226
        // Predicated region
        $region33: #{tpu_custom_call.1} parent=27 // pred_check
          %p228 = pneg %p90
        $region34: #{tpu_custom_call.1} parent=27 // pred_check_branch
          %230 = sbr.rel (%p228) target = $region36
        $region35: #{tpu_custom_call.1} parent=27 // pred_region
          %231 = dma.done %s224, 32
        $region36: #{tpu_custom_call.1} parent=27 // pred_fallthru
          _
        %s232 = sand.u32 %s49, 1
        %s233 = scalar_lea.sflag [#allocation3], %s232
        %s234 = sand.u32 %s49, 1
        %s235 = smul.addr %s234, 8
        %s236 = scalar_lea.vmem [#allocation2], %s235
        %p237 = pneg %p62
        %p238 = pneg %p59
        %s239 = sand.u32 %s77, 1
        %s240 = scalar_lea.sflag [#allocation6], %s239
        %s241 = sand.u32 %s77, 1
        %s242 = smul.addr %s241, 2
        %s243 = scalar_lea.vmem [#allocation5], %s242
        %p244 = pneg %p90
        %p245 = pneg %p87
        %p246 = pneg %p118
        %p247 = pneg %p115
        %s248 = sand.u32 %s105, 1
        %s249 = scalar_lea.sflag [#allocation4], %s248
        %s250 = sand.u32 %s105, 1
        %s251 = smul.addr %s250, 2
        %s252 = scalar_lea.vmem [#allocation7], %s251
        %p253 = pneg %p146
        %p254 = pneg %p143
        %s255 = sand.u32 %s133, 1
        %s256 = scalar_lea.sflag [#allocation9], %s255
        %s257 = sand.u32 %s133, 1
        %s258 = smul.addr %s257, 2
        %s259 = scalar_lea.vmem [#allocation8], %s258
        %s260 = smul.u32 2, %s32
        %s261 = smul.u32 2, %s32
        %s262 = smul.u32 2, %s32
        %v263 = vld [vmem:[%s218] sm:$0xff]
        %v264 = vld [vmem:[%s227] sm:$0x3]
        %v265 = vlaneseq
        %v266 = vshrl.u32 %v265, 7
        %v267 = vlaneseq
        %v268 = vshrl.u32 %v267, 7
        %v269 = vsub.s32 0, %v268
        %v270 = vrot.slane %v264, %v269
        %v271 = vlaneseq
        %v272 = vshrl.u32 %v271, 7
        %v273 = vsub.s32 1, %v272
        %v274 = vrot.slane %v264, %v273
        %vm275 = vcmp.eq.s32.totalorder %v266, %v270
        %vm276 = vcmp.eq.s32.totalorder %v266, %v274
        %v278 = vcombine.high %v263, %v263
        %v280 = vsel %vm275, %v263, 0.0
        %v281 = vsel %vm276, %v278, 0.0
        %vm282 = vcmask 1043456
        %v283 = vsel %vm282, %v263, -inf
        %v284 = vrot.slane %v283, 4
        %v285 = vmax.f32 %v283, %v284
        %v286 = vrot.slane %v285, 2
        %v287 = vmax.f32 %v285, %v286
        %v288 = vrot.slane %v287, 1
        %v289 = vmax.f32 %v287, %v288
        %v290 = vsel %vm282, %v278, -inf
        %v291 = vrot.slane %v290, 4
        %v292 = vmax.f32 %v290, %v291
        %v293 = vrot.slane %v292, 2
        %v294 = vmax.f32 %v292, %v293
        %v295 = vrot.slane %v294, 1
        %v296 = vmax.f32 %v294, %v295
        %v299 = vcombine.low %v289, %v296
        %v301 = vsub.f32 %v263, %v299
        %v302 = vmul.f32 %v301, 1.442695
        %v303 = vpow.pop %v302
        %v305 = vcombine.high %v303, %v303
        %v307 = vsel %vm282, %v303, 0.0
        %v308 = vrot.slane %v307, 4
        %v309 = vadd.f32 %v307, %v308
        %v310 = vrot.slane %v309, 2
        %v311 = vadd.f32 %v309, %v310
        %v312 = vrot.slane %v311, 1
        %v313 = vadd.f32 %v311, %v312
        %v314 = vsel %vm282, %v305, 0.0
        %v315 = vrot.slane %v314, 4
        %v316 = vadd.f32 %v314, %v315
        %v317 = vrot.slane %v316, 2
        %v318 = vadd.f32 %v316, %v317
        %v319 = vrot.slane %v318, 1
        %v320 = vadd.f32 %v318, %v319
        %v321 = vsel %vm282, %v280, 0.0
        %v322 = vrot.slane %v321, 4
        %v323 = vadd.f32 %v321, %v322
        %v324 = vrot.slane %v323, 2
        %v325 = vadd.f32 %v323, %v324
        %v326 = vrot.slane %v325, 1
        %v327 = vadd.f32 %v325, %v326
        %v328 = vsel %vm282, %v281, 0.0
        %v329 = vrot.slane %v328, 4
        %v330 = vadd.f32 %v328, %v329
        %v331 = vrot.slane %v330, 2
        %v332 = vadd.f32 %v330, %v331
        %v333 = vrot.slane %v332, 1
        %v334 = vadd.f32 %v332, %v333
        %v335 = vlog2.pop %v313
        %v336 = vmul.f32 %v335, 0.6931472
        %v337 = vlog2.pop %v320
        %v338 = vmul.f32 %v337, 0.6931472
        %v339 = vadd.f32 %v336, %v289
        %v340 = vadd.f32 %v338, %v296
        %v341 = vsub.f32 %v339, %v327
        %v342 = vsub.f32 %v340, %v334
        %vm343 = vcmp.ge.s32.totalorder %v264, 0
        %vm344 = vcmp.ne.s32.totalorder %v264, 255
        %vm345 = vmand %vm343, %vm344
        %v348 = vcombine.low %v341, %v342
        %v350 = vunpack.c.l.s4 1966171168
        %v351 = vunpack.c.0.s8 %v350
        %v352 = vlaneseq
        %v353 = vshrl.u32 %v352, 7
        %v354 = vsub.s32 %v351, %v353
        %v355 = vrot.slane %v348, %v354
        %v357 = vunpack.c.l.s4 1966171168
        %v358 = vunpack.c.0.s8 %v357
        %v359 = vlaneseq
        %v360 = vshrl.u32 %v359, 7
        %v361 = vsub.s32 %v358, %v360
        %v362 = vrot.slane %v355, %v361
        %v364 = vsel %vm345, %v362, 0.0
        %v365 = vlaneseq
        %vm366 = vcmp.ge.s32.totalorder %v365, 0
        %vm367 = vcmp.lt.s32.totalorder %v365, 256
        %vm368 = vmand %vm366, %vm367
        %369 = vst.msk [vmem:[%s252] sm:$0x3] %vm368, %v364
        %v371 = vlaneseq
        %v372 = vshrl.u32 %v371, 7
        %v373 = vsub.s32 0, %v372
        %v374 = vrot.slane %v364, %v373
        %v375 = vlaneseq
        %v376 = vshrl.u32 %v375, 7
        %v377 = vsub.s32 1, %v376
        %v378 = vrot.slane %v364, %v377
        %vm381 = vcmask 1040384
        %v382 = vsel %vm381, %v374, 0.0
        %v383 = vsel %vm381, %v378, 0.0
        %v384 = vadd.f32 %v382, %v383
        %385 = vadd.xlane.f32.xlu0 %v384
        %v386 = vpop.xlane.xlu0 %385
        %v387 = vsel %vm345, 1, 0
        %v388 = vcvt.s32.f32 %v387
        %v390 = vlaneseq
        %v391 = vshrl.u32 %v390, 7
        %v392 = vsub.s32 0, %v391
        %v393 = vrot.slane %v388, %v392
        %v394 = vlaneseq
        %v395 = vshrl.u32 %v394, 7
        %v396 = vsub.s32 1, %v395
        %v397 = vrot.slane %v388, %v396
        %v400 = vsel %vm381, %v393, 0.0
        %v401 = vsel %vm381, %v397, 0.0
        %v402 = vadd.f32 %v400, %v401
        %403 = vadd.xlane.f32.xlu0 %v402
        %v404 = vpop.xlane.xlu0 %403
        %v406 = vrot.slane %v404, 7
        %v408 = vsel %vm381, %v386, %v406
        %409 = vst [vmem:[%s259] sm:$0x3] %v408
        %s410 = sand.u32 %s105, 1
        %s411 = scalar_lea.sflag [#allocation4], %s410
        %s412 = sand.u32 %s105, 1
        %s413 = smul.addr %s412, 2
        %s414 = scalar_lea.vmem [#allocation7], %s413
        %s415 = sand.u32 %s133, 1
        %s416 = scalar_lea.sflag [#allocation9], %s415
        %s417 = sand.u32 %s133, 1
        %s418 = smul.addr %s417, 2
        %s419 = scalar_lea.vmem [#allocation8], %s418
        // Predicated region
        $region37: #{tpu_custom_call.1} parent=27 // pred_check
          %p420 = pneg %p115
        $region38: #{tpu_custom_call.1} parent=27 // pred_check_branch
          %422 = sbr.rel (%p420) target = $region40
        $region39: #{tpu_custom_call.1} parent=27 // pred_region
          %s423 = smul.u32 2, %s32
          %s425 = ssub.s32 32, 32
          %426 = vsyncadd %s411, %s425
          %s427 = smul.addr %s31, 2
          %s428 = sadd.s32 %s423, %s427
          %s429 = smul.addr %s428, 16
          %s430 = scalar_lea.hbm %s2, %s429
          %s432 = sshll.u32 %s414, 4
          %s433 = int_to_ptr.vmem [resolvable:$true] %s432
          %435 = dma.vmem_to_hbm [thread:$0]  %s433, 32, %s430, %s411
        $region40: #{tpu_custom_call.1} parent=27 // pred_fallthru
          _
        // Predicated region
        $region41: #{tpu_custom_call.1} parent=27 // pred_check
          %p436 = pneg %p143
        $region42: #{tpu_custom_call.1} parent=27 // pred_check_branch
          %438 = sbr.rel (%p436) target = $region44
        $region43: #{tpu_custom_call.1} parent=27 // pred_region
          %s440 = ssub.s32 32, 32
          %441 = vsyncadd %s416, %s440
          %s442 = sadd.s32 %s32, %s31
          %s443 = smul.addr %s442, 32
          %s444 = scalar_lea.hbm %s3, %s443
          %s446 = sshll.u32 %s419, 4
          %s447 = int_to_ptr.vmem [resolvable:$true] %s446
          %449 = dma.vmem_to_hbm [thread:$0]  %s447, 32, %s444, %s416
        $region44: #{tpu_custom_call.1} parent=27 // pred_fallthru
          _
      $region28: #{tpu_custom_call.1} parent=5 // pred_fallthru
        _
      %p450 = scmp.le.s32.totalorder 2, %s22
      // Predicated region
      $region45: #{tpu_custom_call.1} parent=5 // pred_check
        %p451 = pneg %p450
      $region46: #{tpu_custom_call.1} parent=5 // pred_check_branch
        %453 = sbr.rel (%p451) target = $region48
      $region47: #{tpu_custom_call.1} parent=5 // pred_region
        %s454 = ssub.s32 %s22, 2
        // Predicated region
        $region49: #{tpu_custom_call.1} parent=47 // pred_check
          %p455 = pneg %p121
        $region50: #{tpu_custom_call.1} parent=47 // pred_check_branch
          %457 = sbr.rel (%p455) target = $region52
        $region51: #{tpu_custom_call.1} parent=47 // pred_region
          %s458 = sand.u32 %s106, 1
          %s459 = scalar_lea.sflag [#allocation4], %s458
          %s460 = sand.u32 %s106, 1
          %s461 = smul.addr %s460, 2
          %s462 = scalar_lea.vmem [#allocation7], %s461
          %463 = dma.done %s459, 32
        $region52: #{tpu_custom_call.1} parent=47 // pred_fallthru
          _
        // Predicated region
        $region53: #{tpu_custom_call.1} parent=47 // pred_check
          %p464 = pneg %p149
        $region54: #{tpu_custom_call.1} parent=47 // pred_check_branch
          %466 = sbr.rel (%p464) target = $region56
        $region55: #{tpu_custom_call.1} parent=47 // pred_region
          %s467 = sand.u32 %s134, 1
          %s468 = scalar_lea.sflag [#allocation9], %s467
          %s469 = sand.u32 %s134, 1
          %s470 = smul.addr %s469, 2
          %s471 = scalar_lea.vmem [#allocation8], %s470
          %472 = dma.done %s468, 32
        $region56: #{tpu_custom_call.1} parent=47 // pred_fallthru
          _
      $region48: #{tpu_custom_call.1} parent=5 // pred_fallthru
        _
    $region6: #{tpu_custom_call.1} parent=1 // loop_footer
      %s26 = sadd.s32 1, %s22
    $region7: #{tpu_custom_call.1} parent=1 // loop_footer_branch
      %21 = sbr.rel target = $region3
    $region8: #{tpu_custom_call.1} parent=1 // loop_exit
      _
    %473 = vsyncpa [#allocation3], 1
    %s474 = scalar_lea.sflag [#allocation3], 1
    %475 = vsyncpa %s474, 1
    %476 = vsyncpa [#allocation6], 1
    %s477 = scalar_lea.sflag [#allocation6], 1
    %478 = vsyncpa %s477, 1
    %479 = vsyncpa [#allocation4], 1
    %s480 = scalar_lea.sflag [#allocation4], 1
    %481 = vsyncpa %s480, 1
    %482 = vsyncpa [#allocation9], 1
    %s483 = scalar_lea.sflag [#allocation9], 1
    %484 = vsyncpa %s483, 1

</llo_original>
